<compile_context>
chip_gen: v5e
topology: v5e:2x2
jax: 0.10.0
libtpu: 0.0.40
codegen_flags: <defaults>
</compile_context>

<pallas_src>
import jax
import jax.numpy as jnp
from jax.experimental import pallas as pl
from jax.experimental.pallas import tpu as pltpu


def _round_up(x: int, m: int) -> int:
    return ((x + m - 1) // m) * m


def _feature_linear_kernel(idx_ref, val_ref, w_ref, b_ref, o_ref):
    # idx_ref: (TB, F) int32            val_ref: (TB, F) f32
    # w_ref:   (N_pad, D_pad) f32|bf16  (VMEM-resident, single-buffered)
    # b_ref:   (1, D_pad) f32           (VMEM-resident, single-buffered)
    # o_ref:   (TB, D_pad) f32
    idx = idx_ref[...]
    val = val_ref[...]
    tb, num_fields = idx.shape
    n_pad = w_ref.shape[0]

    # Lane index of the (TB, N_pad) one-hot slab; hoisted once per tile.
    iota_n = jax.lax.broadcasted_iota(jnp.int32, (tb, n_pad), 1)

    # Value-scaled one-hot accumulator.  F is small and static, so the fully
    # unrolled loop keeps only one (TB, N_pad) slab live and all column slices
    # are static (no dynamic lane indexing).
    s = jnp.zeros((tb, n_pad), jnp.float32)
    for f in range(num_fields):
        idx_f = idx[:, f:f + 1]                        # (TB, 1)
        val_f = val[:, f:f + 1]                        # (TB, 1)
        s = s + jnp.where(idx_f == iota_n, val_f, 0.0)

    w = w_ref[...]
    # If the table was prepared in bf16 (v6e/v7x), feed the MXU at native bf16
    # rate; accumulation stays f32.  No-op cast on the default f32 path.
    s = s.astype(w.dtype)
    out = jnp.dot(s, w, preferred_element_type=jnp.float32)   # MXU
    o_ref[...] = out + b_ref[...]


def prepare_feature_linear_params(weight, bias, *, compute_dtype=None):
    """Pad (and optionally bf16-cast) the embedding table ONCE, outside the hot
    path.  Returns (w_padded, bias_padded, (num_features, out_features))."""
    N, D = weight.shape
    w_dtype = jnp.float32 if compute_dtype is None else jnp.dtype(compute_dtype)
    d_pad = _round_up(D, 128)                            # lane axis (matmul N)
    sublane = 16 if w_dtype == jnp.dtype(jnp.bfloat16) else 8
    n_pad = _round_up(N, sublane)                        # sublane axis (matmul K)
    w_p = jnp.zeros((n_pad, d_pad), w_dtype).at[:N, :D].set(weight.astype(w_dtype))
    b_p = jnp.zeros((1, d_pad), jnp.float32).at[0, :D].set(
        bias.astype(jnp.float32).reshape(D))
    return w_p, b_p, (N, D)


def _vmem_limit_bytes(resident_bytes_est: int):
    # Default scoped limit is 16 MiB (v5e) / 32 MiB (v6e, v7x).  Only raise it
    # when needed, and never request the chip's entire physical VMEM.
    if resident_bytes_est <= 16 * 1024 * 1024:
        return None
    try:
        phys = int(pltpu.get_tpu_info().vmem_capacity_bytes)
    except Exception:                 # older jax / query unavailable
        phys = 64 * 1024 * 1024       # v7x has the smallest VMEM -> conservative
    cap = phys - 8 * 1024 * 1024      # headroom for compiler internal scratch
    return int(min(resident_bytes_est, cap))


def feature_linear_padded(feature_idx, feature_value, w_p, bias_p, *,
                          out_features: int, block_b: int = 512):
    """Apply FeatureLinear with an already padded/cast table (see
    prepare_feature_linear_params)."""
    B, F = feature_idx.shape
    n_pad, d_pad = w_p.shape

    # Batch tiling: as few grid steps as possible (per-step overhead ~0.35us
    # dominates this small kernel) with minimal padding of ragged batches.
    num_steps = -(-B // block_b)
    tb = max(8, _round_up(-(-B // num_steps), 8))
    b_pad = num_steps * tb

    if b_pad == B:
        idx_p = feature_idx.astype(jnp.int32)
        val_p = feature_value.astype(jnp.float32)
    else:
        idx_p = jnp.zeros((b_pad, F), jnp.int32).at[:B].set(
            feature_idx.astype(jnp.int32))
        val_p = jnp.zeros((b_pad, F), jnp.float32).at[:B].set(
            feature_value.astype(jnp.float32))

    # Resident-VMEM estimate: weight/bias single-buffered, idx/val/out
    # double-buffered, plus the in-kernel one-hot slabs and matmul result.
    w_bytes = jnp.dtype(w_p.dtype).itemsize
    est = (n_pad * d_pad * w_bytes            # weight (1 buffer)
           + d_pad * 4                        # bias   (1 buffer)
           + 2 * tb * F * (4 + 4)             # idx + val (2 buffers each)
           + 2 * tb * d_pad * 4               # output (2 buffers)
           + 2 * tb * n_pad * 4               # S accumulator + iota slab
           + (tb * n_pad * 2 if w_bytes == 2 else 0)   # bf16 copy of S
           + tb * d_pad * 4)                  # f32 matmul result
    vmem_limit = _vmem_limit_bytes(int(est * 1.25))

    def _run(dim_sem, single_buffer_resident):
        if single_buffer_resident:
            # Constant index_map -> block never changes; one buffer is enough.
            resident_kw = dict(pipeline_mode=pl.Buffered(1))
        else:
            resident_kw = {}
        grid_spec = pltpu.PrefetchScalarGridSpec(
            num_scalar_prefetch=0,
            grid=(num_steps,),
            in_specs=[
                pl.BlockSpec((tb, F), lambda i: (i, 0)),          # feature_idx
                pl.BlockSpec((tb, F), lambda i: (i, 0)),          # feature_value
                pl.BlockSpec((n_pad, d_pad), lambda i: (0, 0),    # weight (resident)
                             **resident_kw),
                pl.BlockSpec((1, d_pad), lambda i: (0, 0),        # bias (resident)
                             **resident_kw),
            ],
            out_specs=pl.BlockSpec((tb, d_pad), lambda i: (i, 0)),
        )
        return pl.pallas_call(
            _feature_linear_kernel,
            out_shape=jax.ShapeDtypeStruct((b_pad, d_pad), jnp.float32),
            grid_spec=grid_spec,
            compiler_params=pltpu.CompilerParams(
                dimension_semantics=dim_sem,
                vmem_limit_bytes=vmem_limit,
            ),
        )(idx_p, val_p, w_p, bias_p)

    if num_steps > 1:
        # CORE_PARALLEL is what actually shards a grid axis across v7x's two
        # TensorCores (plain "parallel" does not change codegen for that).
        attempts = [((pltpu.CORE_PARALLEL,), True),
                    (("parallel",), True),
                    (("parallel",), False)]
    else:
        attempts = [(("arbitrary",), True),
                    (("arbitrary",), False)]

    out_p = None
    last_err = None
    for dim_sem, single_buf in attempts:
        try:
            out_p = _run(dim_sem, single_buf)
            break
        except Exception as err:   # defensive: chip/jax rejects an option
            last_err = err
            out_p = None
    if out_p is None:
        raise last_err

    return out_p[:B, :out_features]


def feature_linear(feature_idx, feature_value, weight, bias, *,
                   block_b: int = 512, compute_dtype=None):
    """Convenience wrapper (pads the table per call).  Production code should
    call prepare_feature_linear_params() once and reuse the padded table."""
    w_p, b_p, (_, D) = prepare_feature_linear_params(
        weight, bias, compute_dtype=compute_dtype)
    return feature_linear_padded(feature_idx, feature_value, w_p, b_p,
                                 out_features=D, block_b=block_b)


def _reference(feature_idx, feature_value, weight, bias):
    return jnp.sum(weight[feature_idx] * feature_value[:, :, None], axis=1) + bias


if __name__ == "__main__":
    key = jax.random.PRNGKey(0)

    def _case(case_key, batch_size, num_fields, num_features, out_features,
              block_b):
        k_idx, k_val, k_w, k_b = jax.random.split(case_key, 4)
        feature_idx = jax.random.randint(
            k_idx, (batch_size, num_fields), 0, num_features, dtype=jnp.int32)
        feature_value = jax.random.normal(
            k_val, (batch_size, num_fields), dtype=jnp.float32)
        weight = jax.random.normal(
            k_w, (num_features, out_features), dtype=jnp.float32)
        bias = 0.1 * jax.random.normal(
            k_b, (out_features,), dtype=jnp.float32)

        out = jax.block_until_ready(
            feature_linear(feature_idx, feature_value, weight, bias,
                           block_b=block_b))
        ref = _reference(feature_idx, feature_value, weight, bias)
        assert out.shape == (batch_size, out_features)
        assert jnp.allclose(out, ref, atol=1e-5, rtol=1e-5), "mismatch"

    k1, k2, k3 = jax.random.split(key, 3)
    # Case 1: small shapes matching the module's forward (single grid step).
    _case(k1, batch_size=8, num_fields=8, num_features=32, out_features=32,
          block_b=512)
    # Case 2: non-aligned shapes (N/D padding, ragged batch, single step).
    _case(k2, batch_size=160, num_fields=6, num_features=40, out_features=48,
          block_b=512)
    # Case 3: force multiple grid steps to exercise batch tiling / core-parallel.
    _case(k3, batch_size=160, num_fields=6, num_features=40, out_features=48,
          block_b=64)

    print("KERNEL_OK")
</pallas_src>

<mosaic_0001>
module attributes {stable_mosaic.version = 11 : i64} {
  func.func @_feature_linear_kernel(%arg0: i32, %arg1: memref<8x8xi32, #tpu.memory_space<vmem>>, %arg2: memref<8x8xf32, #tpu.memory_space<vmem>>, %arg3: memref<32x128xf32, #tpu.memory_space<vmem>>, %arg4: memref<1x128xf32, #tpu.memory_space<vmem>>, %arg5: memref<8x128xf32, #tpu.memory_space<vmem>>) attributes {dimension_semantics = [#tpu.dimension_semantics<arbitrary>], iteration_bounds = array<i64: 1>, scalar_prefetch = 0 : i64, scratch_operands = 0 : i64, tpu.core_type = #tpu.core_type<tc>, window_params = [{transform_indices = @transform_0, window_bounds = array<i64: 8, 8>}, {transform_indices = @transform_1, window_bounds = array<i64: 8, 8>}, {pipeline_mode = #tpu.pipeline_mode<synchronous>, transform_indices = @transform_2, window_bounds = array<i64: 32, 128>}, {pipeline_mode = #tpu.pipeline_mode<synchronous>, transform_indices = @transform_3, window_bounds = array<i64: 1, 128>}, {transform_indices = @transform_4, window_bounds = array<i64: 8, 128>}]} {
    %c0 = arith.constant 0 : index
    %c0_0 = arith.constant 0 : index
    %0 = vector.load %arg1[%c0, %c0_0] : memref<8x8xi32, #tpu.memory_space<vmem>>, vector<8x8xi32>
    %c0_1 = arith.constant 0 : index
    %c0_2 = arith.constant 0 : index
    %1 = vector.load %arg2[%c0_1, %c0_2] : memref<8x8xf32, #tpu.memory_space<vmem>>, vector<8x8xf32>
    %2 = tpu.iota {dimensions = array<i32: 1>} : vector<8x32xi32>
    %cst = arith.constant 0.000000e+00 : f32
    %3 = vector.broadcast %cst : f32 to vector<8x32xf32>
    %4 = vector.extract_strided_slice %0 {offsets = [0, 0], sizes = [8, 1], strides = [1, 1]} : vector<8x8xi32> to vector<8x1xi32>
    %5 = vector.extract_strided_slice %1 {offsets = [0, 0], sizes = [8, 1], strides = [1, 1]} : vector<8x8xf32> to vector<8x1xf32>
    %6 = vector.broadcast %4 : vector<8x1xi32> to vector<8x32xi32>
    %7 = arith.cmpi eq, %6, %2 : vector<8x32xi32>
    %cst_3 = arith.constant 0.000000e+00 : f32
    %8 = vector.shape_cast %5 : vector<8x1xf32> to vector<8x1xf32>
    %9 = vector.broadcast %8 : vector<8x1xf32> to vector<8x32xf32>
    %10 = vector.broadcast %cst_3 : f32 to vector<8x32xf32>
    %11 = arith.select %7, %9, %10 : vector<8x32xi1>, vector<8x32xf32>
    %12 = arith.addf %3, %11 : vector<8x32xf32>
    %13 = vector.extract_strided_slice %0 {offsets = [0, 1], sizes = [8, 1], strides = [1, 1]} : vector<8x8xi32> to vector<8x1xi32>
    %14 = vector.extract_strided_slice %1 {offsets = [0, 1], sizes = [8, 1], strides = [1, 1]} : vector<8x8xf32> to vector<8x1xf32>
    %15 = vector.broadcast %13 : vector<8x1xi32> to vector<8x32xi32>
    %16 = arith.cmpi eq, %15, %2 : vector<8x32xi32>
    %cst_4 = arith.constant 0.000000e+00 : f32
    %17 = vector.shape_cast %14 : vector<8x1xf32> to vector<8x1xf32>
    %18 = vector.broadcast %17 : vector<8x1xf32> to vector<8x32xf32>
    %19 = vector.broadcast %cst_4 : f32 to vector<8x32xf32>
    %20 = arith.select %16, %18, %19 : vector<8x32xi1>, vector<8x32xf32>
    %21 = arith.addf %12, %20 : vector<8x32xf32>
    %22 = vector.extract_strided_slice %0 {offsets = [0, 2], sizes = [8, 1], strides = [1, 1]} : vector<8x8xi32> to vector<8x1xi32>
    %23 = vector.extract_strided_slice %1 {offsets = [0, 2], sizes = [8, 1], strides = [1, 1]} : vector<8x8xf32> to vector<8x1xf32>
    %24 = vector.broadcast %22 : vector<8x1xi32> to vector<8x32xi32>
    %25 = arith.cmpi eq, %24, %2 : vector<8x32xi32>
    %cst_5 = arith.constant 0.000000e+00 : f32
    %26 = vector.shape_cast %23 : vector<8x1xf32> to vector<8x1xf32>
    %27 = vector.broadcast %26 : vector<8x1xf32> to vector<8x32xf32>
    %28 = vector.broadcast %cst_5 : f32 to vector<8x32xf32>
    %29 = arith.select %25, %27, %28 : vector<8x32xi1>, vector<8x32xf32>
    %30 = arith.addf %21, %29 : vector<8x32xf32>
    %31 = vector.extract_strided_slice %0 {offsets = [0, 3], sizes = [8, 1], strides = [1, 1]} : vector<8x8xi32> to vector<8x1xi32>
    %32 = vector.extract_strided_slice %1 {offsets = [0, 3], sizes = [8, 1], strides = [1, 1]} : vector<8x8xf32> to vector<8x1xf32>
    %33 = vector.broadcast %31 : vector<8x1xi32> to vector<8x32xi32>
    %34 = arith.cmpi eq, %33, %2 : vector<8x32xi32>
    %cst_6 = arith.constant 0.000000e+00 : f32
    %35 = vector.shape_cast %32 : vector<8x1xf32> to vector<8x1xf32>
    %36 = vector.broadcast %35 : vector<8x1xf32> to vector<8x32xf32>
    %37 = vector.broadcast %cst_6 : f32 to vector<8x32xf32>
    %38 = arith.select %34, %36, %37 : vector<8x32xi1>, vector<8x32xf32>
    %39 = arith.addf %30, %38 : vector<8x32xf32>
    %40 = vector.extract_strided_slice %0 {offsets = [0, 4], sizes = [8, 1], strides = [1, 1]} : vector<8x8xi32> to vector<8x1xi32>
    %41 = vector.extract_strided_slice %1 {offsets = [0, 4], sizes = [8, 1], strides = [1, 1]} : vector<8x8xf32> to vector<8x1xf32>
    %42 = vector.broadcast %40 : vector<8x1xi32> to vector<8x32xi32>
    %43 = arith.cmpi eq, %42, %2 : vector<8x32xi32>
    %cst_7 = arith.constant 0.000000e+00 : f32
    %44 = vector.shape_cast %41 : vector<8x1xf32> to vector<8x1xf32>
    %45 = vector.broadcast %44 : vector<8x1xf32> to vector<8x32xf32>
    %46 = vector.broadcast %cst_7 : f32 to vector<8x32xf32>
    %47 = arith.select %43, %45, %46 : vector<8x32xi1>, vector<8x32xf32>
    %48 = arith.addf %39, %47 : vector<8x32xf32>
    %49 = vector.extract_strided_slice %0 {offsets = [0, 5], sizes = [8, 1], strides = [1, 1]} : vector<8x8xi32> to vector<8x1xi32>
    %50 = vector.extract_strided_slice %1 {offsets = [0, 5], sizes = [8, 1], strides = [1, 1]} : vector<8x8xf32> to vector<8x1xf32>
    %51 = vector.broadcast %49 : vector<8x1xi32> to vector<8x32xi32>
    %52 = arith.cmpi eq, %51, %2 : vector<8x32xi32>
    %cst_8 = arith.constant 0.000000e+00 : f32
    %53 = vector.shape_cast %50 : vector<8x1xf32> to vector<8x1xf32>
    %54 = vector.broadcast %53 : vector<8x1xf32> to vector<8x32xf32>
    %55 = vector.broadcast %cst_8 : f32 to vector<8x32xf32>
    %56 = arith.select %52, %54, %55 : vector<8x32xi1>, vector<8x32xf32>
    %57 = arith.addf %48, %56 : vector<8x32xf32>
    %58 = vector.extract_strided_slice %0 {offsets = [0, 6], sizes = [8, 1], strides = [1, 1]} : vector<8x8xi32> to vector<8x1xi32>
    %59 = vector.extract_strided_slice %1 {offsets = [0, 6], sizes = [8, 1], strides = [1, 1]} : vector<8x8xf32> to vector<8x1xf32>
    %60 = vector.broadcast %58 : vector<8x1xi32> to vector<8x32xi32>
    %61 = arith.cmpi eq, %60, %2 : vector<8x32xi32>
    %cst_9 = arith.constant 0.000000e+00 : f32
    %62 = vector.shape_cast %59 : vector<8x1xf32> to vector<8x1xf32>
    %63 = vector.broadcast %62 : vector<8x1xf32> to vector<8x32xf32>
    %64 = vector.broadcast %cst_9 : f32 to vector<8x32xf32>
    %65 = arith.select %61, %63, %64 : vector<8x32xi1>, vector<8x32xf32>
    %66 = arith.addf %57, %65 : vector<8x32xf32>
    %67 = vector.extract_strided_slice %0 {offsets = [0, 7], sizes = [8, 1], strides = [1, 1]} : vector<8x8xi32> to vector<8x1xi32>
    %68 = vector.extract_strided_slice %1 {offsets = [0, 7], sizes = [8, 1], strides = [1, 1]} : vector<8x8xf32> to vector<8x1xf32>
    %69 = vector.broadcast %67 : vector<8x1xi32> to vector<8x32xi32>
    %70 = arith.cmpi eq, %69, %2 : vector<8x32xi32>
    %cst_10 = arith.constant 0.000000e+00 : f32
    %71 = vector.shape_cast %68 : vector<8x1xf32> to vector<8x1xf32>
    %72 = vector.broadcast %71 : vector<8x1xf32> to vector<8x32xf32>
    %73 = vector.broadcast %cst_10 : f32 to vector<8x32xf32>
    %74 = arith.select %70, %72, %73 : vector<8x32xi1>, vector<8x32xf32>
    %75 = arith.addf %66, %74 : vector<8x32xf32>
    %c0_11 = arith.constant 0 : index
    %c0_12 = arith.constant 0 : index
    %76 = vector.load %arg3[%c0_11, %c0_12] : memref<32x128xf32, #tpu.memory_space<vmem>>, vector<32x128xf32>
    %cst_13 = arith.constant dense<0.000000e+00> : vector<8x128xf32>
    %77 = tpu.matmul %75, %76, %cst_13 {dimension_numbers = #tpu.dot_dimension_numbers<[1], [0], [0], [1], [0, 0, 1, 1], [], []>} : vector<8x32xf32>, vector<32x128xf32>, vector<8x128xf32> -> vector<8x128xf32>
    %c0_14 = arith.constant 0 : index
    %c0_15 = arith.constant 0 : index
    %78 = vector.load %arg4[%c0_14, %c0_15] : memref<1x128xf32, #tpu.memory_space<vmem>>, vector<1x128xf32>
    %79 = vector.broadcast %78 : vector<1x128xf32> to vector<8x128xf32>
    %80 = arith.addf %77, %79 : vector<8x128xf32>
    %c0_16 = arith.constant 0 : index
    %c0_17 = arith.constant 0 : index
    %81 = vector.load %arg5[%c0_16, %c0_17] : memref<8x128xf32, #tpu.memory_space<vmem>>, vector<8x128xf32>
    tpu.vector_store %arg5[%c0_16, %c0_17], %80 {strides = array<i32>} : memref<8x128xf32, #tpu.memory_space<vmem>>, vector<8x128xf32>,
    return
  }
  func.func @transform_0(%arg0: i32) -> (i32, i32) {
    %c0_i32 = arith.constant 0 : i32
    %c0_i32_0 = arith.constant 0 : i32
    return %arg0, %c0_i32 : i32, i32
  }
  func.func @transform_1(%arg0: i32) -> (i32, i32) {
    %c0_i32 = arith.constant 0 : i32
    %c0_i32_0 = arith.constant 0 : i32
    return %arg0, %c0_i32 : i32, i32
  }
  func.func @transform_2(%arg0: i32) -> (i32, i32) {
    %c0_i32 = arith.constant 0 : i32
    %c0_i32_0 = arith.constant 0 : i32
    %c0_i32_1 = arith.constant 0 : i32
    return %c0_i32, %c0_i32_0 : i32, i32
  }
  func.func @transform_3(%arg0: i32) -> (i32, i32) {
    %c0_i32 = arith.constant 0 : i32
    %c0_i32_0 = arith.constant 0 : i32
    %c0_i32_1 = arith.constant 0 : i32
    return %c0_i32, %c0_i32_0 : i32, i32
  }
  func.func @transform_4(%arg0: i32) -> (i32, i32) {
    %c0_i32 = arith.constant 0 : i32
    %c0_i32_0 = arith.constant 0 : i32
    return %arg0, %c0_i32 : i32, i32
  }
}

module attributes {stable_mosaic.version = 11 : i64} {
  func.func @_feature_linear_kernel(%arg0: i32, %arg1: memref<8x8xi32, #tpu.memory_space<vmem>>, %arg2: memref<8x8xf32, #tpu.memory_space<vmem>>, %arg3: memref<32x128xf32, #tpu.memory_space<vmem>>, %arg4: memref<1x128xf32, #tpu.memory_space<vmem>>, %arg5: memref<8x128xf32, #tpu.memory_space<vmem>>) attributes {dimension_semantics = [#tpu.dimension_semantics<arbitrary>], iteration_bounds = array<i64: 1>, scalar_prefetch = 0 : i64, scratch_operands = 0 : i64, tpu.core_type = #tpu.core_type<tc>, window_params = [{transform_indices = @transform_0, window_bounds = array<i64: 8, 8>}, {transform_indices = @transform_1, window_bounds = array<i64: 8, 8>}, {pipeline_mode = #tpu.pipeline_mode<synchronous>, transform_indices = @transform_2, window_bounds = array<i64: 32, 128>}, {pipeline_mode = #tpu.pipeline_mode<synchronous>, transform_indices = @transform_3, window_bounds = array<i64: 1, 128>}, {transform_indices = @transform_4, window_bounds = array<i64: 8, 128>}]} {
    %c0 = arith.constant 0 : index
    %c0_0 = arith.constant 0 : index
    %0 = vector.load %arg1[%c0, %c0_0] : memref<8x8xi32, #tpu.memory_space<vmem>>, vector<8x8xi32>
    %c0_1 = arith.constant 0 : index
    %c0_2 = arith.constant 0 : index
    %1 = vector.load %arg2[%c0_1, %c0_2] : memref<8x8xf32, #tpu.memory_space<vmem>>, vector<8x8xf32>
    %2 = tpu.iota {dimensions = array<i32: 1>} : vector<8x32xi32>
    %cst = arith.constant 0.000000e+00 : f32
    %3 = vector.broadcast %cst : f32 to vector<8x32xf32>
    %4 = vector.extract_strided_slice %0 {offsets = [0, 0], sizes = [8, 1], strides = [1, 1]} : vector<8x8xi32> to vector<8x1xi32>
    %5 = vector.extract_strided_slice %1 {offsets = [0, 0], sizes = [8, 1], strides = [1, 1]} : vector<8x8xf32> to vector<8x1xf32>
    %6 = vector.broadcast %4 : vector<8x1xi32> to vector<8x32xi32>
    %7 = arith.cmpi eq, %6, %2 : vector<8x32xi32>
    %cst_3 = arith.constant 0.000000e+00 : f32
    %8 = vector.shape_cast %5 : vector<8x1xf32> to vector<8x1xf32>
    %9 = vector.broadcast %8 : vector<8x1xf32> to vector<8x32xf32>
    %10 = vector.broadcast %cst_3 : f32 to vector<8x32xf32>
    %11 = arith.select %7, %9, %10 : vector<8x32xi1>, vector<8x32xf32>
    %12 = arith.addf %3, %11 : vector<8x32xf32>
    %13 = vector.extract_strided_slice %0 {offsets = [0, 1], sizes = [8, 1], strides = [1, 1]} : vector<8x8xi32> to vector<8x1xi32>
    %14 = vector.extract_strided_slice %1 {offsets = [0, 1], sizes = [8, 1], strides = [1, 1]} : vector<8x8xf32> to vector<8x1xf32>
    %15 = vector.broadcast %13 : vector<8x1xi32> to vector<8x32xi32>
    %16 = arith.cmpi eq, %15, %2 : vector<8x32xi32>
    %cst_4 = arith.constant 0.000000e+00 : f32
    %17 = vector.shape_cast %14 : vector<8x1xf32> to vector<8x1xf32>
    %18 = vector.broadcast %17 : vector<8x1xf32> to vector<8x32xf32>
    %19 = vector.broadcast %cst_4 : f32 to vector<8x32xf32>
    %20 = arith.select %16, %18, %19 : vector<8x32xi1>, vector<8x32xf32>
    %21 = arith.addf %12, %20 : vector<8x32xf32>
    %22 = vector.extract_strided_slice %0 {offsets = [0, 2], sizes = [8, 1], strides = [1, 1]} : vector<8x8xi32> to vector<8x1xi32>
    %23 = vector.extract_strided_slice %1 {offsets = [0, 2], sizes = [8, 1], strides = [1, 1]} : vector<8x8xf32> to vector<8x1xf32>
    %24 = vector.broadcast %22 : vector<8x1xi32> to vector<8x32xi32>
    %25 = arith.cmpi eq, %24, %2 : vector<8x32xi32>
    %cst_5 = arith.constant 0.000000e+00 : f32
    %26 = vector.shape_cast %23 : vector<8x1xf32> to vector<8x1xf32>
    %27 = vector.broadcast %26 : vector<8x1xf32> to vector<8x32xf32>
    %28 = vector.broadcast %cst_5 : f32 to vector<8x32xf32>
    %29 = arith.select %25, %27, %28 : vector<8x32xi1>, vector<8x32xf32>
    %30 = arith.addf %21, %29 : vector<8x32xf32>
    %31 = vector.extract_strided_slice %0 {offsets = [0, 3], sizes = [8, 1], strides = [1, 1]} : vector<8x8xi32> to vector<8x1xi32>
    %32 = vector.extract_strided_slice %1 {offsets = [0, 3], sizes = [8, 1], strides = [1, 1]} : vector<8x8xf32> to vector<8x1xf32>
    %33 = vector.broadcast %31 : vector<8x1xi32> to vector<8x32xi32>
    %34 = arith.cmpi eq, %33, %2 : vector<8x32xi32>
    %cst_6 = arith.constant 0.000000e+00 : f32
    %35 = vector.shape_cast %32 : vector<8x1xf32> to vector<8x1xf32>
    %36 = vector.broadcast %35 : vector<8x1xf32> to vector<8x32xf32>
    %37 = vector.broadcast %cst_6 : f32 to vector<8x32xf32>
    %38 = arith.select %34, %36, %37 : vector<8x32xi1>, vector<8x32xf32>
    %39 = arith.addf %30, %38 : vector<8x32xf32>
    %40 = vector.extract_strided_slice %0 {offsets = [0, 4], sizes = [8, 1], strides = [1, 1]} : vector<8x8xi32> to vector<8x1xi32>
    %41 = vector.extract_strided_slice %1 {offsets = [0, 4], sizes = [8, 1], strides = [1, 1]} : vector<8x8xf32> to vector<8x1xf32>
    %42 = vector.broadcast %40 : vector<8x1xi32> to vector<8x32xi32>
    %43 = arith.cmpi eq, %42, %2 : vector<8x32xi32>
    %cst_7 = arith.constant 0.000000e+00 : f32
    %44 = vector.shape_cast %41 : vector<8x1xf32> to vector<8x1xf32>
    %45 = vector.broadcast %44 : vector<8x1xf32> to vector<8x32xf32>
    %46 = vector.broadcast %cst_7 : f32 to vector<8x32xf32>
    %47 = arith.select %43, %45, %46 : vector<8x32xi1>, vector<8x32xf32>
    %48 = arith.addf %39, %47 : vector<8x32xf32>
    %49 = vector.extract_strided_slice %0 {offsets = [0, 5], sizes = [8, 1], strides = [1, 1]} : vector<8x8xi32> to vector<8x1xi32>
    %50 = vector.extract_strided_slice %1 {offsets = [0, 5], sizes = [8, 1], strides = [1, 1]} : vector<8x8xf32> to vector<8x1xf32>
    %51 = vector.broadcast %49 : vector<8x1xi32> to vector<8x32xi32>
    %52 = arith.cmpi eq, %51, %2 : vector<8x32xi32>
    %cst_8 = arith.constant 0.000000e+00 : f32
    %53 = vector.shape_cast %50 : vector<8x1xf32> to vector<8x1xf32>
    %54 = vector.broadcast %53 : vector<8x1xf32> to vector<8x32xf32>
    %55 = vector.broadcast %cst_8 : f32 to vector<8x32xf32>
    %56 = arith.select %52, %54, %55 : vector<8x32xi1>, vector<8x32xf32>
    %57 = arith.addf %48, %56 : vector<8x32xf32>
    %58 = vector.extract_strided_slice %0 {offsets = [0, 6], sizes = [8, 1], strides = [1, 1]} : vector<8x8xi32> to vector<8x1xi32>
    %59 = vector.extract_strided_slice %1 {offsets = [0, 6], sizes = [8, 1], strides = [1, 1]} : vector<8x8xf32> to vector<8x1xf32>
    %60 = vector.broadcast %58 : vector<8x1xi32> to vector<8x32xi32>
    %61 = arith.cmpi eq, %60, %2 : vector<8x32xi32>
    %cst_9 = arith.constant 0.000000e+00 : f32
    %62 = vector.shape_cast %59 : vector<8x1xf32> to vector<8x1xf32>
    %63 = vector.broadcast %62 : vector<8x1xf32> to vector<8x32xf32>
    %64 = vector.broadcast %cst_9 : f32 to vector<8x32xf32>
    %65 = arith.select %61, %63, %64 : vector<8x32xi1>, vector<8x32xf32>
    %66 = arith.addf %57, %65 : vector<8x32xf32>
    %67 = vector.extract_strided_slice %0 {offsets = [0, 7], sizes = [8, 1], strides = [1, 1]} : vector<8x8xi32> to vector<8x1xi32>
    %68 = vector.extract_strided_slice %1 {offsets = [0, 7], sizes = [8, 1], strides = [1, 1]} : vector<8x8xf32> to vector<8x1xf32>
    %69 = vector.broadcast %67 : vector<8x1xi32> to vector<8x32xi32>
    %70 = arith.cmpi eq, %69, %2 : vector<8x32xi32>
    %cst_10 = arith.constant 0.000000e+00 : f32
    %71 = vector.shape_cast %68 : vector<8x1xf32> to vector<8x1xf32>
    %72 = vector.broadcast %71 : vector<8x1xf32> to vector<8x32xf32>
    %73 = vector.broadcast %cst_10 : f32 to vector<8x32xf32>
    %74 = arith.select %70, %72, %73 : vector<8x32xi1>, vector<8x32xf32>
    %75 = arith.addf %66, %74 : vector<8x32xf32>
    %c0_11 = arith.constant 0 : index
    %c0_12 = arith.constant 0 : index
    %76 = vector.load %arg3[%c0_11, %c0_12] : memref<32x128xf32, #tpu.memory_space<vmem>>, vector<32x128xf32>
    %cst_13 = arith.constant dense<0.000000e+00> : vector<8x128xf32>
    %77 = tpu.matmul %75, %76, %cst_13 {dimension_numbers = #tpu.dot_dimension_numbers<[1], [0], [0], [1], [0, 0, 1, 1], [], []>} : vector<8x32xf32>, vector<32x128xf32>, vector<8x128xf32> -> vector<8x128xf32>
    %c0_14 = arith.constant 0 : index
    %c0_15 = arith.constant 0 : index
    %78 = vector.load %arg4[%c0_14, %c0_15] : memref<1x128xf32, #tpu.memory_space<vmem>>, vector<1x128xf32>
    %79 = vector.broadcast %78 : vector<1x128xf32> to vector<8x128xf32>
    %80 = arith.addf %77, %79 : vector<8x128xf32>
    %c0_16 = arith.constant 0 : index
    %c0_17 = arith.constant 0 : index
    %81 = vector.load %arg5[%c0_16, %c0_17] : memref<8x128xf32, #tpu.memory_space<vmem>>, vector<8x128xf32>
    tpu.vector_store %arg5[%c0_16, %c0_17], %80 {strides = array<i32>} : memref<8x128xf32, #tpu.memory_space<vmem>>, vector<8x128xf32>,
    return
  }
  func.func @transform_0(%arg0: i32) -> (i32, i32) {
    %c0_i32 = arith.constant 0 : i32
    %c0_i32_0 = arith.constant 0 : i32
    return %arg0, %c0_i32 : i32, i32
  }
  func.func @transform_1(%arg0: i32) -> (i32, i32) {
    %c0_i32 = arith.constant 0 : i32
    %c0_i32_0 = arith.constant 0 : i32
    return %arg0, %c0_i32 : i32, i32
  }
  func.func @transform_2(%arg0: i32) -> (i32, i32) {
    %c0_i32 = arith.constant 0 : i32
    %c0_i32_0 = arith.constant 0 : i32
    %c0_i32_1 = arith.constant 0 : i32
    return %c0_i32, %c0_i32_0 : i32, i32
  }
  func.func @transform_3(%arg0: i32) -> (i32, i32) {
    %c0_i32 = arith.constant 0 : i32
    %c0_i32_0 = arith.constant 0 : i32
    %c0_i32_1 = arith.constant 0 : i32
    return %c0_i32, %c0_i32_0 : i32, i32
  }
  func.func @transform_4(%arg0: i32) -> (i32, i32) {
    %c0_i32 = arith.constant 0 : i32
    %c0_i32_0 = arith.constant 0 : i32
    return %arg0, %c0_i32 : i32, i32
  }
}

</mosaic_0001>

<llo_original>
// kernel: tpu_custom_call.1
$region0: #{tpu_custom_call.1}
  #allocation0 [shape = 'u32[]', space=smem, size = 0x4, offset = 0x4, fixed_abs, tag = 'smem constant byte address 0x4 - core index']
  #allocation1 [shape = 'u32[72,128]{1,0:T(1,128)}', space=vmem, size = 0x9000, scoped, tag = 'internal scratch']
  %s0 = inlined_call_operand.hbm [shape: s32[8,8], index: 0, kind: input, shape index: {}]
  %s1 = inlined_call_operand.hbm [shape: f32[8,8], index: 1, kind: input, shape index: {}]
  %s2 = inlined_call_operand.hbm [shape: f32[32,128], index: 2, kind: input, shape index: {}]
  %s3 = inlined_call_operand.vmem [shape: f32[1,128], index: 3, kind: input, shape index: {}]
  %s4 = inlined_call_operand.hbm [shape: f32[8,128], index: 4, kind: output, shape index: {}]
  %s5 = sld [smem:[#allocation0]]
  $region38: #{tpu_custom_call.1} parent=0
    _
  %s7 = ssub.s32 1, %s5
  %s8 = scalar_select 0, %s7, %s5
  $region1: #{tpu_custom_call.1} parent=0
    #allocation2 [shape = 'u8[4096]{0}', space=vmem, size = 0x1000, scoped, tag = 'input window, operand 0, single buffered']
    #allocation3 [shape = 's32[1]{0}', space=sflag, size = 0x4, scoped, tag = 'scoped memory for tpu_custom_call.1']
    #allocation4 [shape = 's32[1]{0}', space=sflag, size = 0x4, scoped, tag = 'scoped memory for tpu_custom_call.1']
    #allocation5 [shape = 'u8[4096]{0}', space=vmem, size = 0x1000, scoped, tag = 'input window, operand 1, single buffered']
    #allocation6 [shape = 's32[1]{0}', space=sflag, size = 0x4, scoped, tag = 'scoped memory for tpu_custom_call.1']
    #allocation7 [shape = 'u8[16384]{0}', space=vmem, size = 0x4000, scoped, tag = 'input window, operand 2, single buffered']
    #allocation8 [shape = 'u8[4096]{0}', space=vmem, size = 0x1000, scoped, tag = 'output window, operand 0, single buffered']
    %9 = vsyncpa [#allocation3], 0
    %10 = vsyncpa [#allocation6], 0
    %11 = vsyncpa [#allocation4], 0
    // Predicated region
    $region2: #{tpu_custom_call.1} parent=1 // pred_check
      _
    $region3: #{tpu_custom_call.1} parent=1 // pred_check_branch
      %13 = sbr.rel (0) target = $region5
    $region4: #{tpu_custom_call.1} parent=1 // pred_region
      %15 = vsyncadd [#allocation3], 0
      %s17 = sshll.u32 %s0, 4
      %s18 = int_to_ptr.hbm [resolvable:$true] %s17
      %s19 = sshll.u32 [#allocation2], 4
      %s20 = int_to_ptr.vmem [resolvable:$true] %s19
      %22 = dma.hbm_to_vmem [thread:$0]  %s18, 128, %s20, [#allocation3]
    $region5: #{tpu_custom_call.1} parent=1 // pred_fallthru
      _
    // Predicated region
    $region6: #{tpu_custom_call.1} parent=1 // pred_check
      _
    $region7: #{tpu_custom_call.1} parent=1 // pred_check_branch
      %24 = sbr.rel (0) target = $region9
    $region8: #{tpu_custom_call.1} parent=1 // pred_region
      %26 = vsyncadd [#allocation6], 0
      %s28 = sshll.u32 %s1, 4
      %s29 = int_to_ptr.hbm [resolvable:$true] %s28
      %s30 = sshll.u32 [#allocation5], 4
      %s31 = int_to_ptr.vmem [resolvable:$true] %s30
      %33 = dma.hbm_to_vmem [thread:$0]  %s29, 128, %s31, [#allocation6]
    $region9: #{tpu_custom_call.1} parent=1 // pred_fallthru
      _
    // Predicated region
    $region10: #{tpu_custom_call.1} parent=1 // pred_check
      _
    $region11: #{tpu_custom_call.1} parent=1 // pred_check_branch
      %35 = sbr.rel (0) target = $region13
    $region12: #{tpu_custom_call.1} parent=1 // pred_region
      %37 = vsyncadd [#allocation6], 0
      %s38 = sshll.u32 %s2, 4
      %s39 = int_to_ptr.hbm [resolvable:$true] %s38
      %s40 = sshll.u32 [#allocation7], 4
      %s41 = int_to_ptr.vmem [resolvable:$true] %s40
      %46 = dma.hbm_to_vmem [thread:$0]  %s39, 512, %s41, [#allocation6], 128, 128, 8
    $region13: #{tpu_custom_call.1} parent=1 // pred_fallthru
      _
    // Predicated region
    $region14: #{tpu_custom_call.1} parent=1 // pred_check
      _
    $region15: #{tpu_custom_call.1} parent=1 // pred_check_branch
      %48 = sbr.rel (0) target = $region17
    $region16: #{tpu_custom_call.1} parent=1 // pred_region
      _
    $region17: #{tpu_custom_call.1} parent=1 // pred_fallthru
      _
    // Predicated region
    $region18: #{tpu_custom_call.1} parent=1 // pred_check
      _
    $region19: #{tpu_custom_call.1} parent=1 // pred_check_branch
      %50 = sbr.rel (0) target = $region21
    $region20: #{tpu_custom_call.1} parent=1 // pred_region
      %52 = dma.done [#allocation3], 128
    $region21: #{tpu_custom_call.1} parent=1 // pred_fallthru
      _
    // Predicated region
    $region22: #{tpu_custom_call.1} parent=1 // pred_check
      _
    $region23: #{tpu_custom_call.1} parent=1 // pred_check_branch
      %54 = sbr.rel (0) target = $region25
    $region24: #{tpu_custom_call.1} parent=1 // pred_region
      %56 = dma.done [#allocation6], 128
    $region25: #{tpu_custom_call.1} parent=1 // pred_fallthru
      _
    // Predicated region
    $region26: #{tpu_custom_call.1} parent=1 // pred_check
      _
    $region27: #{tpu_custom_call.1} parent=1 // pred_check_branch
      %58 = sbr.rel (0) target = $region29
    $region28: #{tpu_custom_call.1} parent=1 // pred_region
      %60 = dma.done [#allocation6], 512
    $region29: #{tpu_custom_call.1} parent=1 // pred_fallthru
      _
    %v61 = vld [vmem:[#allocation2] sm:$0xff]
    %v62 = vld [vmem:[#allocation5] sm:$0xff]
    %v63 = vlaneseq
    %v64 = vand.u32 %v63, 127
    %65 = vset.pattern.permute.xlu0 0
    %66 = vperm.xlu0 %65, %v61
    %v67 = vpop.permute.xlu0 %66
    %vm68 = vcmp.eq.s32.totalorder %v67, %v64
    %70 = vset.pattern.permute.xlu0 0
    %71 = vperm.xlu0 %70, %v62
    %v72 = vpop.permute.xlu0 %71
    %v74 = vsel %vm68, %v72, 0.0
    %v75 = vadd.f32 %v74, 0.0
    %76 = vset.pattern.permute.xlu0 1
    %77 = vperm.xlu0 %76, %v61
    %v78 = vpop.permute.xlu0 %77
    %vm79 = vcmp.eq.s32.totalorder %v78, %v64
    %80 = vset.pattern.permute.xlu0 1
    %81 = vperm.xlu0 %80, %v62
    %v82 = vpop.permute.xlu0 %81
    %v84 = vsel %vm79, %v82, 0.0
    %v85 = vadd.f32 %v75, %v84
    %86 = vset.pattern.permute.xlu0 2
    %87 = vperm.xlu0 %86, %v61
    %v88 = vpop.permute.xlu0 %87
    %vm89 = vcmp.eq.s32.totalorder %v88, %v64
    %90 = vset.pattern.permute.xlu0 2
    %91 = vperm.xlu0 %90, %v62
    %v92 = vpop.permute.xlu0 %91
    %v94 = vsel %vm89, %v92, 0.0
    %v95 = vadd.f32 %v85, %v94
    %96 = vset.pattern.permute.xlu0 3
    %97 = vperm.xlu0 %96, %v61
    %v98 = vpop.permute.xlu0 %97
    %vm99 = vcmp.eq.s32.totalorder %v98, %v64
    %100 = vset.pattern.permute.xlu0 3
    %101 = vperm.xlu0 %100, %v62
    %v102 = vpop.permute.xlu0 %101
    %v104 = vsel %vm99, %v102, 0.0
    %v105 = vadd.f32 %v95, %v104
    %106 = vset.pattern.permute.xlu0 4
    %107 = vperm.xlu0 %106, %v61
    %v108 = vpop.permute.xlu0 %107
    %vm109 = vcmp.eq.s32.totalorder %v108, %v64
    %110 = vset.pattern.permute.xlu0 4
    %111 = vperm.xlu0 %110, %v62
    %v112 = vpop.permute.xlu0 %111
    %v114 = vsel %vm109, %v112, 0.0
    %v115 = vadd.f32 %v105, %v114
    %116 = vset.pattern.permute.xlu0 5
    %117 = vperm.xlu0 %116, %v61
    %v118 = vpop.permute.xlu0 %117
    %vm119 = vcmp.eq.s32.totalorder %v118, %v64
    %120 = vset.pattern.permute.xlu0 5
    %121 = vperm.xlu0 %120, %v62
    %v122 = vpop.permute.xlu0 %121
    %v124 = vsel %vm119, %v122, 0.0
    %v125 = vadd.f32 %v115, %v124
    %126 = vset.pattern.permute.xlu0 6
    %127 = vperm.xlu0 %126, %v61
    %v128 = vpop.permute.xlu0 %127
    %vm129 = vcmp.eq.s32.totalorder %v128, %v64
    %130 = vset.pattern.permute.xlu0 6
    %131 = vperm.xlu0 %130, %v62
    %v132 = vpop.permute.xlu0 %131
    %v134 = vsel %vm129, %v132, 0.0
    %v135 = vadd.f32 %v125, %v134
    %136 = vset.pattern.permute.xlu0 7
    %137 = vperm.xlu0 %136, %v61
    %v138 = vpop.permute.xlu0 %137
    %vm139 = vcmp.eq.s32.totalorder %v138, %v64
    %140 = vset.pattern.permute.xlu0 7
    %141 = vperm.xlu0 %140, %v62
    %v142 = vpop.permute.xlu0 %141
    %v144 = vsel %vm139, %v142, 0.0
    %v145 = vadd.f32 %v135, %v144
    %v146 = vld [vmem:[#allocation7] sm:$0xff]
    %v147 = vld [vmem:[#allocation7 + $0x8] sm:$0xff]
    %v148 = vld [vmem:[#allocation7 + $0x10] sm:$0xff]
    %v149 = vld [vmem:[#allocation7 + $0x18] sm:$0xff]
    %v150 = vld [vmem:[%s3] sm:$0x1]
    %v152 = vperm.slane %v150, 0
    %vm154 = vcmask 261120
    %v156 = vsel %vm154, %v145, 0
    %158 = vmatpush.msra.mxu0 0.0
    %159 = vmatpush.msra.mxu0 0.0
    %160 = vmatpush.msra.mxu0 0.0
    %161 = vmatpush.msra.mxu0 0.0
    %162 = vmatpush.msra.mxu0 0.0
    %163 = vmatpush.msra.mxu0 0.0
    %164 = vmatpush.msra.mxu0 0.0
    %165 = vmatpush.msra.mxu0 0.0
    %166 = vmatpush.msra.mxu0 0.0
    %167 = vmatpush.msra.mxu0 0.0
    %168 = vmatpush.msra.mxu0 0.0
    %169 = vmatpush.msra.mxu0 0.0
    %170 = vmatpush.msra.mxu0 %v149
    %171 = vmatpush.msra.mxu0 %v148
    %172 = vmatpush.msra.mxu0 %v147
    %173 = vmatpush.msra.mxu0 %v146
    %174 = vmatmul.f32.gmra.mxu0 %v156
    %v175 = vpop.f32.mrf.mxu0
    %v176 = vadd.f32 %v152, %v175
    %177 = vdwg.mxu0
    %178 = vst [vmem:[#allocation8] sm:$0xff] %v176
    // Predicated region
    $region30: #{tpu_custom_call.1} parent=1 // pred_check
      _
    $region31: #{tpu_custom_call.1} parent=1 // pred_check_branch
      %180 = sbr.rel (0) target = $region33
    $region32: #{tpu_custom_call.1} parent=1 // pred_region
      %182 = vsyncadd [#allocation4], 0
      %s184 = sshll.u32 [#allocation8], 4
      %s185 = int_to_ptr.vmem [resolvable:$true] %s184
      %s186 = sshll.u32 %s4, 4
      %s187 = int_to_ptr.hbm [resolvable:$true] %s186
      %189 = dma.vmem_to_hbm [thread:$0]  %s185, 128, %s187, [#allocation4]
    $region33: #{tpu_custom_call.1} parent=1 // pred_fallthru
      _
    // Predicated region
    $region34: #{tpu_custom_call.1} parent=1 // pred_check
      _
    $region35: #{tpu_custom_call.1} parent=1 // pred_check_branch
      %191 = sbr.rel (0) target = $region37
    $region36: #{tpu_custom_call.1} parent=1 // pred_region
      %193 = dma.done [#allocation4], 128
    $region37: #{tpu_custom_call.1} parent=1 // pred_fallthru
      _
    %194 = vsyncpa [#allocation3], 1
    %195 = vsyncpa [#allocation6], 1
    %196 = vsyncpa [#allocation4], 1

// kernel: tpu_custom_call.1
$region0: #{tpu_custom_call.1}
  #allocation0 [shape = 'u32[]', space=smem, size = 0x4, offset = 0x4, fixed_abs, tag = 'smem constant byte address 0x4 - core index']
  #allocation1 [shape = 'u32[72,128]{1,0:T(1,128)}', space=vmem, size = 0x9000, scoped, tag = 'internal scratch']
  %s0 = inlined_call_operand.hbm [shape: s32[8,8], index: 0, kind: input, shape index: {}]
  %s1 = inlined_call_operand.hbm [shape: f32[8,8], index: 1, kind: input, shape index: {}]
  %s2 = inlined_call_operand.hbm [shape: f32[32,128], index: 2, kind: input, shape index: {}]
  %s3 = inlined_call_operand.vmem [shape: f32[1,128], index: 3, kind: input, shape index: {}]
  %s4 = inlined_call_operand.hbm [shape: f32[8,128], index: 4, kind: output, shape index: {}]
  %s5 = sld [smem:[#allocation0]]
  $region38: #{tpu_custom_call.1} parent=0
    _
  %s7 = ssub.s32 1, %s5
  %s8 = scalar_select 0, %s7, %s5
  $region1: #{tpu_custom_call.1} parent=0
    #allocation2 [shape = 'u8[4096]{0}', space=vmem, size = 0x1000, scoped, tag = 'input window, operand 0, single buffered']
    #allocation3 [shape = 's32[1]{0}', space=sflag, size = 0x4, scoped, tag = 'scoped memory for tpu_custom_call.1']
    #allocation4 [shape = 's32[1]{0}', space=sflag, size = 0x4, scoped, tag = 'scoped memory for tpu_custom_call.1']
    #allocation5 [shape = 'u8[4096]{0}', space=vmem, size = 0x1000, scoped, tag = 'input window, operand 1, single buffered']
    #allocation6 [shape = 's32[1]{0}', space=sflag, size = 0x4, scoped, tag = 'scoped memory for tpu_custom_call.1']
    #allocation7 [shape = 'u8[16384]{0}', space=vmem, size = 0x4000, scoped, tag = 'input window, operand 2, single buffered']
    #allocation8 [shape = 'u8[4096]{0}', space=vmem, size = 0x1000, scoped, tag = 'output window, operand 0, single buffered']
    %9 = vsyncpa [#allocation3], 0
    %10 = vsyncpa [#allocation6], 0
    %11 = vsyncpa [#allocation4], 0
    // Predicated region
    $region2: #{tpu_custom_call.1} parent=1 // pred_check
      _
    $region3: #{tpu_custom_call.1} parent=1 // pred_check_branch
      %13 = sbr.rel (0) target = $region5
    $region4: #{tpu_custom_call.1} parent=1 // pred_region
      %15 = vsyncadd [#allocation3], 0
      %s17 = sshll.u32 %s0, 4
      %s18 = int_to_ptr.hbm [resolvable:$true] %s17
      %s19 = sshll.u32 [#allocation2], 4
      %s20 = int_to_ptr.vmem [resolvable:$true] %s19
      %22 = dma.hbm_to_vmem [thread:$0]  %s18, 128, %s20, [#allocation3]
    $region5: #{tpu_custom_call.1} parent=1 // pred_fallthru
      _
    // Predicated region
    $region6: #{tpu_custom_call.1} parent=1 // pred_check
      _
    $region7: #{tpu_custom_call.1} parent=1 // pred_check_branch
      %24 = sbr.rel (0) target = $region9
    $region8: #{tpu_custom_call.1} parent=1 // pred_region
      %26 = vsyncadd [#allocation6], 0
      %s28 = sshll.u32 %s1, 4
      %s29 = int_to_ptr.hbm [resolvable:$true] %s28
      %s30 = sshll.u32 [#allocation5], 4
      %s31 = int_to_ptr.vmem [resolvable:$true] %s30
      %33 = dma.hbm_to_vmem [thread:$0]  %s29, 128, %s31, [#allocation6]
    $region9: #{tpu_custom_call.1} parent=1 // pred_fallthru
      _
    // Predicated region
    $region10: #{tpu_custom_call.1} parent=1 // pred_check
      _
    $region11: #{tpu_custom_call.1} parent=1 // pred_check_branch
      %35 = sbr.rel (0) target = $region13
    $region12: #{tpu_custom_call.1} parent=1 // pred_region
      %37 = vsyncadd [#allocation6], 0
      %s38 = sshll.u32 %s2, 4
      %s39 = int_to_ptr.hbm [resolvable:$true] %s38
      %s40 = sshll.u32 [#allocation7], 4
      %s41 = int_to_ptr.vmem [resolvable:$true] %s40
      %46 = dma.hbm_to_vmem [thread:$0]  %s39, 512, %s41, [#allocation6], 128, 128, 8
    $region13: #{tpu_custom_call.1} parent=1 // pred_fallthru
      _
    // Predicated region
    $region14: #{tpu_custom_call.1} parent=1 // pred_check
      _
    $region15: #{tpu_custom_call.1} parent=1 // pred_check_branch
      %48 = sbr.rel (0) target = $region17
    $region16: #{tpu_custom_call.1} parent=1 // pred_region
      _
    $region17: #{tpu_custom_call.1} parent=1 // pred_fallthru
      _
    // Predicated region
    $region18: #{tpu_custom_call.1} parent=1 // pred_check
      _
    $region19: #{tpu_custom_call.1} parent=1 // pred_check_branch
      %50 = sbr.rel (0) target = $region21
    $region20: #{tpu_custom_call.1} parent=1 // pred_region
      %52 = dma.done [#allocation3], 128
    $region21: #{tpu_custom_call.1} parent=1 // pred_fallthru
      _
    // Predicated region
    $region22: #{tpu_custom_call.1} parent=1 // pred_check
      _
    $region23: #{tpu_custom_call.1} parent=1 // pred_check_branch
      %54 = sbr.rel (0) target = $region25
    $region24: #{tpu_custom_call.1} parent=1 // pred_region
      %56 = dma.done [#allocation6], 128
    $region25: #{tpu_custom_call.1} parent=1 // pred_fallthru
      _
    // Predicated region
    $region26: #{tpu_custom_call.1} parent=1 // pred_check
      _
    $region27: #{tpu_custom_call.1} parent=1 // pred_check_branch
      %58 = sbr.rel (0) target = $region29
    $region28: #{tpu_custom_call.1} parent=1 // pred_region
      %60 = dma.done [#allocation6], 512
    $region29: #{tpu_custom_call.1} parent=1 // pred_fallthru
      _
    %v61 = vld [vmem:[#allocation2] sm:$0xff]
    %v62 = vld [vmem:[#allocation5] sm:$0xff]
    %v63 = vlaneseq
    %v64 = vand.u32 %v63, 127
    %65 = vset.pattern.permute.xlu0 0
    %66 = vperm.xlu0 %65, %v61
    %v67 = vpop.permute.xlu0 %66
    %vm68 = vcmp.eq.s32.totalorder %v67, %v64
    %70 = vset.pattern.permute.xlu0 0
    %71 = vperm.xlu0 %70, %v62
    %v72 = vpop.permute.xlu0 %71
    %v74 = vsel %vm68, %v72, 0.0
    %v75 = vadd.f32 %v74, 0.0
    %76 = vset.pattern.permute.xlu0 1
    %77 = vperm.xlu0 %76, %v61
    %v78 = vpop.permute.xlu0 %77
    %vm79 = vcmp.eq.s32.totalorder %v78, %v64
    %80 = vset.pattern.permute.xlu0 1
    %81 = vperm.xlu0 %80, %v62
    %v82 = vpop.permute.xlu0 %81
    %v84 = vsel %vm79, %v82, 0.0
    %v85 = vadd.f32 %v75, %v84
    %86 = vset.pattern.permute.xlu0 2
    %87 = vperm.xlu0 %86, %v61
    %v88 = vpop.permute.xlu0 %87
    %vm89 = vcmp.eq.s32.totalorder %v88, %v64
    %90 = vset.pattern.permute.xlu0 2
    %91 = vperm.xlu0 %90, %v62
    %v92 = vpop.permute.xlu0 %91
    %v94 = vsel %vm89, %v92, 0.0
    %v95 = vadd.f32 %v85, %v94
    %96 = vset.pattern.permute.xlu0 3
    %97 = vperm.xlu0 %96, %v61
    %v98 = vpop.permute.xlu0 %97
    %vm99 = vcmp.eq.s32.totalorder %v98, %v64
    %100 = vset.pattern.permute.xlu0 3
    %101 = vperm.xlu0 %100, %v62
    %v102 = vpop.permute.xlu0 %101
    %v104 = vsel %vm99, %v102, 0.0
    %v105 = vadd.f32 %v95, %v104
    %106 = vset.pattern.permute.xlu0 4
    %107 = vperm.xlu0 %106, %v61
    %v108 = vpop.permute.xlu0 %107
    %vm109 = vcmp.eq.s32.totalorder %v108, %v64
    %110 = vset.pattern.permute.xlu0 4
    %111 = vperm.xlu0 %110, %v62
    %v112 = vpop.permute.xlu0 %111
    %v114 = vsel %vm109, %v112, 0.0
    %v115 = vadd.f32 %v105, %v114
    %116 = vset.pattern.permute.xlu0 5
    %117 = vperm.xlu0 %116, %v61
    %v118 = vpop.permute.xlu0 %117
    %vm119 = vcmp.eq.s32.totalorder %v118, %v64
    %120 = vset.pattern.permute.xlu0 5
    %121 = vperm.xlu0 %120, %v62
    %v122 = vpop.permute.xlu0 %121
    %v124 = vsel %vm119, %v122, 0.0
    %v125 = vadd.f32 %v115, %v124
    %126 = vset.pattern.permute.xlu0 6
    %127 = vperm.xlu0 %126, %v61
    %v128 = vpop.permute.xlu0 %127
    %vm129 = vcmp.eq.s32.totalorder %v128, %v64
    %130 = vset.pattern.permute.xlu0 6
    %131 = vperm.xlu0 %130, %v62
    %v132 = vpop.permute.xlu0 %131
    %v134 = vsel %vm129, %v132, 0.0
    %v135 = vadd.f32 %v125, %v134
    %136 = vset.pattern.permute.xlu0 7
    %137 = vperm.xlu0 %136, %v61
    %v138 = vpop.permute.xlu0 %137
    %vm139 = vcmp.eq.s32.totalorder %v138, %v64
    %140 = vset.pattern.permute.xlu0 7
    %141 = vperm.xlu0 %140, %v62
    %v142 = vpop.permute.xlu0 %141
    %v144 = vsel %vm139, %v142, 0.0
    %v145 = vadd.f32 %v135, %v144
    %v146 = vld [vmem:[#allocation7] sm:$0xff]
    %v147 = vld [vmem:[#allocation7 + $0x8] sm:$0xff]
    %v148 = vld [vmem:[#allocation7 + $0x10] sm:$0xff]
    %v149 = vld [vmem:[#allocation7 + $0x18] sm:$0xff]
    %v150 = vld [vmem:[%s3] sm:$0x1]
    %v152 = vperm.slane %v150, 0
    %vm154 = vcmask 261120
    %v156 = vsel %vm154, %v145, 0
    %158 = vmatpush.msra.mxu0 0.0
    %159 = vmatpush.msra.mxu0 0.0
    %160 = vmatpush.msra.mxu0 0.0
    %161 = vmatpush.msra.mxu0 0.0
    %162 = vmatpush.msra.mxu0 0.0
    %163 = vmatpush.msra.mxu0 0.0
    %164 = vmatpush.msra.mxu0 0.0
    %165 = vmatpush.msra.mxu0 0.0
    %166 = vmatpush.msra.mxu0 0.0
    %167 = vmatpush.msra.mxu0 0.0
    %168 = vmatpush.msra.mxu0 0.0
    %169 = vmatpush.msra.mxu0 0.0
    %170 = vmatpush.msra.mxu0 %v149
    %171 = vmatpush.msra.mxu0 %v148
    %172 = vmatpush.msra.mxu0 %v147
    %173 = vmatpush.msra.mxu0 %v146
    %174 = vmatmul.f32.gmra.mxu0 %v156
    %v175 = vpop.f32.mrf.mxu0
    %v176 = vadd.f32 %v152, %v175
    %177 = vdwg.mxu0
    %178 = vst [vmem:[#allocation8] sm:$0xff] %v176
    // Predicated region
    $region30: #{tpu_custom_call.1} parent=1 // pred_check
      _
    $region31: #{tpu_custom_call.1} parent=1 // pred_check_branch
      %180 = sbr.rel (0) target = $region33
    $region32: #{tpu_custom_call.1} parent=1 // pred_region
      %182 = vsyncadd [#allocation4], 0
      %s184 = sshll.u32 [#allocation8], 4
      %s185 = int_to_ptr.vmem [resolvable:$true] %s184
      %s186 = sshll.u32 %s4, 4
      %s187 = int_to_ptr.hbm [resolvable:$true] %s186
      %189 = dma.vmem_to_hbm [thread:$0]  %s185, 128, %s187, [#allocation4]
    $region33: #{tpu_custom_call.1} parent=1 // pred_fallthru
      _
    // Predicated region
    $region34: #{tpu_custom_call.1} parent=1 // pred_check
      _
    $region35: #{tpu_custom_call.1} parent=1 // pred_check_branch
      %191 = sbr.rel (0) target = $region37
    $region36: #{tpu_custom_call.1} parent=1 // pred_region
      %193 = dma.done [#allocation4], 128
    $region37: #{tpu_custom_call.1} parent=1 // pred_fallthru
      _
    %194 = vsyncpa [#allocation3], 1
    %195 = vsyncpa [#allocation6], 1
    %196 = vsyncpa [#allocation4], 1

</llo_original>
